<compile_context>
chip_gen: v6e
topology: v6e:2x2x1
jax: 0.10.0
libtpu: 0.0.40
codegen_flags: <defaults>
</compile_context>

<pallas_src>
import functools
import math

import jax
import jax.numpy as jnp
from jax.experimental import pallas as pl
from jax.experimental.pallas import tpu as pltpu

REPARAM_NOISE = 1e-6
_HALF_LOG_2PI = 0.5 * math.log(2.0 * math.pi)
_LANES = 128


def _round_up(x, m):
    return ((x + m - 1) // m) * m


def actor_kernel(max_action, a_pad,
                 state_ref, eps_ref,
                 w1_ref, b1_ref, w2_ref, b2_ref, w3_ref, b3_ref,
                 whead_ref, bhead_ref,
                 out_ref):
    """One batch tile: MLP(s->256->256->256, ReLU) -> fused [mu|sigma] head ->
    tanh-squashed rsample + log_prob, stored lane-dense as
    [action*max_action (a_pad lanes) | log_prob (a_pad lanes)]."""
    # Hidden layers: MXU in bf16 with f32 accumulation; bias+ReLU in f32,
    # then only a bf16 activation is carried into the next matmul.
    x = state_ref[...]
    h = jnp.maximum(
        jnp.dot(x.astype(jnp.bfloat16), w1_ref[...],
                preferred_element_type=jnp.float32) + b1_ref[...],
        0.0).astype(jnp.bfloat16)
    h = jnp.maximum(
        jnp.dot(h, w2_ref[...],
                preferred_element_type=jnp.float32) + b2_ref[...],
        0.0).astype(jnp.bfloat16)
    h = jnp.maximum(
        jnp.dot(h, w3_ref[...],
                preferred_element_type=jnp.float32) + b3_ref[...],
        0.0).astype(jnp.bfloat16)

    # Fused lane-dense head: one (hidden, 2*a_pad) matmul; mu in lanes
    # [0, a_pad), sigma in [a_pad, 2*a_pad). Pad columns are zero.
    head = jnp.dot(h, whead_ref[...],
                   preferred_element_type=jnp.float32) + bhead_ref[...]
    mu = head[:, :a_pad]
    sigma = jnp.clip(head[:, a_pad:], REPARAM_NOISE, 1.0)

    # rsample + tanh squash; (a_sample - mu)/sigma == eps by construction,
    # so Normal.log_prob uses eps directly (no subtract / divide).
    eps = eps_ref[...]
    a_sample = mu + sigma * eps
    action = jnp.tanh(a_sample)

    log_prob = -0.5 * eps * eps - jnp.log(sigma) - _HALF_LOG_2PI
    log_prob = log_prob - jnp.log(1.0 - action * action + REPARAM_NOISE)

    # Lane-dense packed store: both halves are 128-lane aligned (unmasked vst).
    out_ref[:, :a_pad] = action * max_action
    out_ref[:, a_pad:] = log_prob


def actor_forward(state, eps, params, max_action, *, max_tile_b=512):
    """state: (B, s_dim) f32, eps: (B, a_dim) f32 ~ N(0,1), params: dict
    produced by pack_params/init_params. Returns (action, log_prob),
    both (B, a_dim), matching the PyTorch Actor.forward semantics."""
    B, s_dim = state.shape
    a_dim = eps.shape[1]
    s_pad, hidden = params["w1"].shape
    a_pad = params["whead"].shape[1] // 2
    assert s_dim <= s_pad and a_dim <= a_pad

    # Even-split batch tiling (avoids up-to-2x padding of min/round_up logic);
    # multiple-of-16 tiles keep bf16 sublane packing clean.
    n_tiles = max(1, -(-B // max_tile_b))           # ceil(B / max_tile_b)
    tile_b = _round_up(-(-B // n_tiles), 16)        # even split, 16-aligned
    B_pad = n_tiles * tile_b

    # Lane-dense inputs: pad state / eps last dims to the padded widths used
    # by w1 and the [mu|sigma] head. Pad lanes / rows are zero and are dropped
    # by the wrapper slice below.
    state_p = jnp.zeros((B_pad, s_pad), jnp.float32).at[:B, :s_dim].set(state)
    eps_p = jnp.zeros((B_pad, a_pad), jnp.float32).at[:B, :a_dim].set(eps)

    inputs = (state_p, eps_p,
              params["w1"], params["b1"],
              params["w2"], params["b2"],
              params["w3"], params["b3"],
              params["whead"], params["bhead"])

    def tile_map(i):          # batch-tiled arrays
        return (i, 0)

    def resident_map(i):      # weights / biases: same block every step
        return (0, 0)

    in_specs = [
        pl.BlockSpec((tile_b, s_pad), tile_map),          # state (lane-dense)
        pl.BlockSpec((tile_b, a_pad), tile_map),          # eps (lane-dense)
        pl.BlockSpec((s_pad, hidden), resident_map),      # w1 (bf16)
        pl.BlockSpec((1, hidden), resident_map),          # b1
        pl.BlockSpec((hidden, hidden), resident_map),     # w2 (bf16)
        pl.BlockSpec((1, hidden), resident_map),          # b2
        pl.BlockSpec((hidden, hidden), resident_map),     # w3 (bf16)
        pl.BlockSpec((1, hidden), resident_map),          # b3
        pl.BlockSpec((hidden, 2 * a_pad), resident_map),  # whead (bf16)
        pl.BlockSpec((1, 2 * a_pad), resident_map),       # bhead
    ]
    out_spec = pl.BlockSpec((tile_b, 2 * a_pad), tile_map)

    weight_bytes = sum(int(params[k].size) * params[k].dtype.itemsize
                       for k in ("w1", "b1", "w2", "b2", "w3", "b3",
                                 "whead", "bhead"))
    cost = pl.CostEstimate(
        flops=2 * B_pad * (s_pad * hidden + 2 * hidden * hidden
                           + hidden * 2 * a_pad),
        transcendentals=3 * B_pad * a_pad,
        bytes_accessed=weight_bytes + state_p.size * 4 + eps_p.size * 4
        + B_pad * 2 * a_pad * 4,
    )

    packed = pl.pallas_call(
        functools.partial(actor_kernel, float(max_action), a_pad),
        out_shape=jax.ShapeDtypeStruct((B_pad, 2 * a_pad), jnp.float32),
        grid_spec=pltpu.PrefetchScalarGridSpec(
            num_scalar_prefetch=0,
            grid=(n_tiles,),
            in_specs=in_specs,
            out_specs=out_spec,
        ),
        compiler_params=pltpu.CompilerParams(
            dimension_semantics=("parallel",)),
        cost_estimate=cost,
    )(*inputs)

    action = packed[:B, :a_dim]
    log_prob = packed[:B, a_pad:a_pad + a_dim]
    return action, log_prob


def pack_params(w1, b1, w2, b2, w3, b3, wmu, bmu, wsig, bsig):
    """Lay out logical (in_features, out_features) weights for the kernel:
      * w1 rows zero-padded to s_pad (multiple of 128) so state can be a
        lane-dense block,
      * mu / sigma heads fused and zero-padded into 128-lane halves:
        whead = [wmu | 0 | wsig | 0]  -> (hidden, 2*a_pad),
      * hidden / head weights in bf16 (MXU dtype), biases in f32.
    """
    s_dim, hidden = w1.shape
    a_dim = wmu.shape[1]
    s_pad = _round_up(s_dim, _LANES)
    a_pad = _round_up(a_dim, _LANES)

    w1_p = jnp.zeros((s_pad, hidden), jnp.float32).at[:s_dim].set(w1)

    def pad_cols(x, width):
        return jnp.zeros((x.shape[0], width), jnp.float32).at[:, :x.shape[1]].set(x)

    whead = jnp.concatenate([pad_cols(wmu, a_pad), pad_cols(wsig, a_pad)], axis=1)
    bhead = jnp.concatenate([pad_cols(bmu, a_pad), pad_cols(bsig, a_pad)], axis=1)

    return dict(
        w1=w1_p.astype(jnp.bfloat16), b1=b1,
        w2=w2.astype(jnp.bfloat16), b2=b2,
        w3=w3.astype(jnp.bfloat16), b3=b3,
        whead=whead.astype(jnp.bfloat16), bhead=bhead,
    )


def init_params(key, s_dim, a_dim, hidden=256):
    """Synthetic init matching Actor.__init__ layer shapes."""
    ks = jax.random.split(key, 5)

    def linear(k, fan_in, fan_out):
        kw, kb = jax.random.split(k)
        bound = 1.0 / math.sqrt(fan_in)
        w = jax.random.uniform(kw, (fan_in, fan_out), jnp.float32, -bound, bound)
        b = jax.random.uniform(kb, (1, fan_out), jnp.float32, -bound, bound)
        return w, b

    w1, b1 = linear(ks[0], s_dim, hidden)
    w2, b2 = linear(ks[1], hidden, hidden)
    w3, b3 = linear(ks[2], hidden, hidden)
    wmu, bmu = linear(ks[3], hidden, a_dim)
    wsig, bsig = linear(ks[4], hidden, a_dim)
    return pack_params(w1, b1, w2, b2, w3, b3, wmu, bmu, wsig, bsig)


def actor_reference(state, eps, params, max_action):
    """Pure-JAX reference replicating the kernel's dtype handling."""
    B, s_dim = state.shape
    a_dim = eps.shape[1]
    s_pad = params["w1"].shape[0]
    a_pad = params["whead"].shape[1] // 2
    x = jnp.zeros((B, s_pad), jnp.float32).at[:, :s_dim].set(state)

    def layer(x, w, b):
        y = jnp.dot(x.astype(jnp.bfloat16), w,
                    preferred_element_type=jnp.float32) + b
        return jnp.maximum(y, 0.0).astype(jnp.bfloat16)

    h = layer(x, params["w1"], params["b1"])
    h = layer(h, params["w2"], params["b2"])
    h = layer(h, params["w3"], params["b3"])
    head = jnp.dot(h, params["whead"],
                   preferred_element_type=jnp.float32) + params["bhead"]
    mu = head[:, :a_dim]
    sigma = jnp.clip(head[:, a_pad:a_pad + a_dim], REPARAM_NOISE, 1.0)
    a_sample = mu + sigma * eps
    action = jnp.tanh(a_sample)
    log_prob = (-0.5 * eps * eps - jnp.log(sigma) - _HALF_LOG_2PI
                - jnp.log(1.0 - action * action + REPARAM_NOISE))
    return action * max_action, log_prob


if __name__ == "__main__":
    key = jax.random.PRNGKey(0)
    k_params, k_state, k_eps = jax.random.split(key, 3)

    B, S_DIM, A_DIM = 8, 32, 8
    MAX_ACTION = 2.0

    params = init_params(k_params, S_DIM, A_DIM)
    state = jax.random.normal(k_state, (B, S_DIM), jnp.float32)
    eps = jax.random.normal(k_eps, (B, A_DIM), jnp.float32)  # rsample noise

    action, log_prob = actor_forward(state, eps, params, MAX_ACTION)
    jax.block_until_ready((action, log_prob))

    assert action.shape == (B, A_DIM) and log_prob.shape == (B, A_DIM)
    assert bool(jnp.all(jnp.isfinite(action))) and bool(jnp.all(jnp.isfinite(log_prob)))
    assert bool(jnp.all(jnp.abs(action) <= MAX_ACTION + 1e-5))

    a_ref, lp_ref = actor_reference(state, eps, params, MAX_ACTION)
    assert bool(jnp.allclose(action, a_ref, rtol=1e-2, atol=1e-2))
    assert bool(jnp.allclose(log_prob, lp_ref, rtol=1e-2, atol=1e-2))
    print("KERNEL_OK")
</pallas_src>

<mosaic_0001>
module attributes {stable_mosaic.version = 11 : i64} {
  func.func @actor_kernel(%arg0: i32, %arg1: memref<16x128xf32, #tpu.memory_space<vmem>>, %arg2: memref<16x128xf32, #tpu.memory_space<vmem>>, %arg3: memref<128x256xbf16, #tpu.memory_space<vmem>>, %arg4: memref<1x256xf32, #tpu.memory_space<vmem>>, %arg5: memref<256x256xbf16, #tpu.memory_space<vmem>>, %arg6: memref<1x256xf32, #tpu.memory_space<vmem>>, %arg7: memref<256x256xbf16, #tpu.memory_space<vmem>>, %arg8: memref<1x256xf32, #tpu.memory_space<vmem>>, %arg9: memref<256x256xbf16, #tpu.memory_space<vmem>>, %arg10: memref<1x256xf32, #tpu.memory_space<vmem>>, %arg11: memref<16x256xf32, #tpu.memory_space<vmem>>) attributes {dimension_semantics = [#tpu.dimension_semantics<parallel>], iteration_bounds = array<i64: 1>, scalar_prefetch = 0 : i64, scratch_operands = 0 : i64, tpu.core_type = #tpu.core_type<tc>, window_params = [{transform_indices = @transform_0, window_bounds = array<i64: 16, 128>}, {transform_indices = @transform_1, window_bounds = array<i64: 16, 128>}, {pipeline_mode = #tpu.pipeline_mode<synchronous>, transform_indices = @transform_2, window_bounds = array<i64: 128, 256>}, {pipeline_mode = #tpu.pipeline_mode<synchronous>, transform_indices = @transform_3, window_bounds = array<i64: 1, 256>}, {pipeline_mode = #tpu.pipeline_mode<synchronous>, transform_indices = @transform_4, window_bounds = array<i64: 256, 256>}, {pipeline_mode = #tpu.pipeline_mode<synchronous>, transform_indices = @transform_5, window_bounds = array<i64: 1, 256>}, {pipeline_mode = #tpu.pipeline_mode<synchronous>, transform_indices = @transform_6, window_bounds = array<i64: 256, 256>}, {pipeline_mode = #tpu.pipeline_mode<synchronous>, transform_indices = @transform_7, window_bounds = array<i64: 1, 256>}, {pipeline_mode = #tpu.pipeline_mode<synchronous>, transform_indices = @transform_8, window_bounds = array<i64: 256, 256>}, {pipeline_mode = #tpu.pipeline_mode<synchronous>, transform_indices = @transform_9, window_bounds = array<i64: 1, 256>}, {transform_indices = @transform_10, window_bounds = array<i64: 16, 256>}]} {
    %c0 = arith.constant 0 : index
    %c0_0 = arith.constant 0 : index
    %0 = vector.load %arg1[%c0, %c0_0] : memref<16x128xf32, #tpu.memory_space<vmem>>, vector<16x128xf32>
    %1 = arith.truncf %0 : vector<16x128xf32> to vector<16x128xbf16>
    %c0_1 = arith.constant 0 : index
    %c0_2 = arith.constant 0 : index
    %2 = vector.load %arg3[%c0_1, %c0_2] : memref<128x256xbf16, #tpu.memory_space<vmem>>, vector<128x256xbf16>
    %cst = arith.constant dense<0.000000e+00> : vector<16x256xf32>
    %3 = tpu.matmul %1, %2, %cst {dimension_numbers = #tpu.dot_dimension_numbers<[1], [0], [0], [1], [0, 0, 1, 1], [], []>} : vector<16x128xbf16>, vector<128x256xbf16>, vector<16x256xf32> -> vector<16x256xf32>
    %c0_3 = arith.constant 0 : index
    %c0_4 = arith.constant 0 : index
    %4 = vector.load %arg4[%c0_3, %c0_4] : memref<1x256xf32, #tpu.memory_space<vmem>>, vector<1x256xf32>
    %5 = vector.broadcast %4 : vector<1x256xf32> to vector<16x256xf32>
    %6 = arith.addf %3, %5 : vector<16x256xf32>
    %cst_5 = arith.constant 0.000000e+00 : f32
    %7 = vector.broadcast %cst_5 : f32 to vector<16x256xf32>
    %8 = arith.maximumf %6, %7 : vector<16x256xf32>
    %9 = arith.truncf %8 : vector<16x256xf32> to vector<16x256xbf16>
    %c0_6 = arith.constant 0 : index
    %c0_7 = arith.constant 0 : index
    %10 = vector.load %arg5[%c0_6, %c0_7] : memref<256x256xbf16, #tpu.memory_space<vmem>>, vector<256x256xbf16>
    %cst_8 = arith.constant dense<0.000000e+00> : vector<16x256xf32>
    %11 = tpu.matmul %9, %10, %cst_8 {dimension_numbers = #tpu.dot_dimension_numbers<[1], [0], [0], [1], [0, 0, 1, 1], [], []>} : vector<16x256xbf16>, vector<256x256xbf16>, vector<16x256xf32> -> vector<16x256xf32>
    %c0_9 = arith.constant 0 : index
    %c0_10 = arith.constant 0 : index
    %12 = vector.load %arg6[%c0_9, %c0_10] : memref<1x256xf32, #tpu.memory_space<vmem>>, vector<1x256xf32>
    %13 = vector.broadcast %12 : vector<1x256xf32> to vector<16x256xf32>
    %14 = arith.addf %11, %13 : vector<16x256xf32>
    %cst_11 = arith.constant 0.000000e+00 : f32
    %15 = vector.broadcast %cst_11 : f32 to vector<16x256xf32>
    %16 = arith.maximumf %14, %15 : vector<16x256xf32>
    %17 = arith.truncf %16 : vector<16x256xf32> to vector<16x256xbf16>
    %c0_12 = arith.constant 0 : index
    %c0_13 = arith.constant 0 : index
    %18 = vector.load %arg7[%c0_12, %c0_13] : memref<256x256xbf16, #tpu.memory_space<vmem>>, vector<256x256xbf16>
    %cst_14 = arith.constant dense<0.000000e+00> : vector<16x256xf32>
    %19 = tpu.matmul %17, %18, %cst_14 {dimension_numbers = #tpu.dot_dimension_numbers<[1], [0], [0], [1], [0, 0, 1, 1], [], []>} : vector<16x256xbf16>, vector<256x256xbf16>, vector<16x256xf32> -> vector<16x256xf32>
    %c0_15 = arith.constant 0 : index
    %c0_16 = arith.constant 0 : index
    %20 = vector.load %arg8[%c0_15, %c0_16] : memref<1x256xf32, #tpu.memory_space<vmem>>, vector<1x256xf32>
    %21 = vector.broadcast %20 : vector<1x256xf32> to vector<16x256xf32>
    %22 = arith.addf %19, %21 : vector<16x256xf32>
    %cst_17 = arith.constant 0.000000e+00 : f32
    %23 = vector.broadcast %cst_17 : f32 to vector<16x256xf32>
    %24 = arith.maximumf %22, %23 : vector<16x256xf32>
    %25 = arith.truncf %24 : vector<16x256xf32> to vector<16x256xbf16>
    %c0_18 = arith.constant 0 : index
    %c0_19 = arith.constant 0 : index
    %26 = vector.load %arg9[%c0_18, %c0_19] : memref<256x256xbf16, #tpu.memory_space<vmem>>, vector<256x256xbf16>
    %cst_20 = arith.constant dense<0.000000e+00> : vector<16x256xf32>
    %27 = tpu.matmul %25, %26, %cst_20 {dimension_numbers = #tpu.dot_dimension_numbers<[1], [0], [0], [1], [0, 0, 1, 1], [], []>} : vector<16x256xbf16>, vector<256x256xbf16>, vector<16x256xf32> -> vector<16x256xf32>
    %c0_21 = arith.constant 0 : index
    %c0_22 = arith.constant 0 : index
    %28 = vector.load %arg10[%c0_21, %c0_22] : memref<1x256xf32, #tpu.memory_space<vmem>>, vector<1x256xf32>
    %29 = vector.broadcast %28 : vector<1x256xf32> to vector<16x256xf32>
    %30 = arith.addf %27, %29 : vector<16x256xf32>
    %31 = vector.extract_strided_slice %30 {offsets = [0, 0], sizes = [16, 128], strides = [1, 1]} : vector<16x256xf32> to vector<16x128xf32>
    %32 = vector.extract_strided_slice %30 {offsets = [0, 128], sizes = [16, 128], strides = [1, 1]} : vector<16x256xf32> to vector<16x128xf32>
    %cst_23 = arith.constant 9.99999997E-7 : f32
    %cst_24 = arith.constant 1.000000e+00 : f32
    %33 = vector.broadcast %cst_23 : f32 to vector<16x128xf32>
    %34 = arith.maximumf %33, %32 : vector<16x128xf32>
    %35 = vector.broadcast %cst_24 : f32 to vector<16x128xf32>
    %36 = arith.minimumf %35, %34 : vector<16x128xf32>
    %c0_25 = arith.constant 0 : index
    %c0_26 = arith.constant 0 : index
    %37 = vector.load %arg2[%c0_25, %c0_26] : memref<16x128xf32, #tpu.memory_space<vmem>>, vector<16x128xf32>
    %38 = arith.mulf %36, %37 : vector<16x128xf32>
    %39 = arith.addf %31, %38 : vector<16x128xf32>
    %40 = math.tanh %39 : vector<16x128xf32>
    %cst_27 = arith.constant -5.000000e-01 : f32
    %41 = vector.broadcast %cst_27 : f32 to vector<16x128xf32>
    %42 = arith.mulf %41, %37 : vector<16x128xf32>
    %43 = arith.mulf %42, %37 : vector<16x128xf32>
    %44 = math.log %36 : vector<16x128xf32>
    %45 = arith.subf %43, %44 : vector<16x128xf32>
    %cst_28 = arith.constant 0.918938517 : f32
    %46 = vector.broadcast %cst_28 : f32 to vector<16x128xf32>
    %47 = arith.subf %45, %46 : vector<16x128xf32>
    %48 = arith.mulf %40, %40 : vector<16x128xf32>
    %cst_29 = arith.constant 1.000000e+00 : f32
    %49 = vector.broadcast %cst_29 : f32 to vector<16x128xf32>
    %50 = arith.subf %49, %48 : vector<16x128xf32>
    %cst_30 = arith.constant 9.99999997E-7 : f32
    %51 = vector.broadcast %cst_30 : f32 to vector<16x128xf32>
    %52 = arith.addf %50, %51 : vector<16x128xf32>
    %53 = math.log %52 : vector<16x128xf32>
    %54 = arith.subf %47, %53 : vector<16x128xf32>
    %cst_31 = arith.constant 2.000000e+00 : f32
    %55 = vector.broadcast %cst_31 : f32 to vector<16x128xf32>
    %56 = arith.mulf %40, %55 : vector<16x128xf32>
    %c0_32 = arith.constant 0 : index
    %c0_33 = arith.constant 0 : index
    %57 = vector.load %arg11[%c0_32, %c0_33] : memref<16x256xf32, #tpu.memory_space<vmem>>, vector<16x128xf32>
    tpu.vector_store %arg11[%c0_32, %c0_33], %56 {strides = array<i32>} : memref<16x256xf32, #tpu.memory_space<vmem>>, vector<16x128xf32>,
    %c0_34 = arith.constant 0 : index
    %c128 = arith.constant 128 : index
    %58 = vector.load %arg11[%c0_34, %c128] : memref<16x256xf32, #tpu.memory_space<vmem>>, vector<16x128xf32>
    tpu.vector_store %arg11[%c0_34, %c128], %54 {strides = array<i32>} : memref<16x256xf32, #tpu.memory_space<vmem>>, vector<16x128xf32>,
    return
  }
  func.func @transform_0(%arg0: i32) -> (i32, i32) {
    %c0_i32 = arith.constant 0 : i32
    %c0_i32_0 = arith.constant 0 : i32
    return %arg0, %c0_i32 : i32, i32
  }
  func.func @transform_1(%arg0: i32) -> (i32, i32) {
    %c0_i32 = arith.constant 0 : i32
    %c0_i32_0 = arith.constant 0 : i32
    return %arg0, %c0_i32 : i32, i32
  }
  func.func @transform_2(%arg0: i32) -> (i32, i32) {
    %c0_i32 = arith.constant 0 : i32
    %c0_i32_0 = arith.constant 0 : i32
    %c0_i32_1 = arith.constant 0 : i32
    return %c0_i32, %c0_i32_0 : i32, i32
  }
  func.func @transform_3(%arg0: i32) -> (i32, i32) {
    %c0_i32 = arith.constant 0 : i32
    %c0_i32_0 = arith.constant 0 : i32
    %c0_i32_1 = arith.constant 0 : i32
    return %c0_i32, %c0_i32_0 : i32, i32
  }
  func.func @transform_4(%arg0: i32) -> (i32, i32) {
    %c0_i32 = arith.constant 0 : i32
    %c0_i32_0 = arith.constant 0 : i32
    %c0_i32_1 = arith.constant 0 : i32
    return %c0_i32, %c0_i32_0 : i32, i32
  }
  func.func @transform_5(%arg0: i32) -> (i32, i32) {
    %c0_i32 = arith.constant 0 : i32
    %c0_i32_0 = arith.constant 0 : i32
    %c0_i32_1 = arith.constant 0 : i32
    return %c0_i32, %c0_i32_0 : i32, i32
  }
  func.func @transform_6(%arg0: i32) -> (i32, i32) {
    %c0_i32 = arith.constant 0 : i32
    %c0_i32_0 = arith.constant 0 : i32
    %c0_i32_1 = arith.constant 0 : i32
    return %c0_i32, %c0_i32_0 : i32, i32
  }
  func.func @transform_7(%arg0: i32) -> (i32, i32) {
    %c0_i32 = arith.constant 0 : i32
    %c0_i32_0 = arith.constant 0 : i32
    %c0_i32_1 = arith.constant 0 : i32
    return %c0_i32, %c0_i32_0 : i32, i32
  }
  func.func @transform_8(%arg0: i32) -> (i32, i32) {
    %c0_i32 = arith.constant 0 : i32
    %c0_i32_0 = arith.constant 0 : i32
    %c0_i32_1 = arith.constant 0 : i32
    return %c0_i32, %c0_i32_0 : i32, i32
  }
  func.func @transform_9(%arg0: i32) -> (i32, i32) {
    %c0_i32 = arith.constant 0 : i32
    %c0_i32_0 = arith.constant 0 : i32
    %c0_i32_1 = arith.constant 0 : i32
    return %c0_i32, %c0_i32_0 : i32, i32
  }
  func.func @transform_10(%arg0: i32) -> (i32, i32) {
    %c0_i32 = arith.constant 0 : i32
    %c0_i32_0 = arith.constant 0 : i32
    return %arg0, %c0_i32 : i32, i32
  }
}

</mosaic_0001>

<llo_original>
// kernel: tpu_custom_call.1
$region0: #{tpu_custom_call.1}
  #allocation0 [shape = 'u32[]', space=smem, size = 0x4, offset = 0x4, fixed_abs, tag = 'smem constant byte address 0x4 - core index']
  #allocation1 [shape = 'u32[144,128]{1,0:T(1,128)}', space=vmem, size = 0x12000, scoped, tag = 'internal scratch']
  %s0 = inlined_call_operand.hbm [shape: f32[16,128], index: 0, kind: input, shape index: {}]
  %s1 = inlined_call_operand.hbm [shape: f32[16,128], index: 1, kind: input, shape index: {}]
  %s2 = inlined_call_operand.hbm [shape: bf16[128,256], index: 2, kind: input, shape index: {}]
  %s3 = inlined_call_operand.vmem [shape: f32[1,256], index: 3, kind: input, shape index: {}]
  %s4 = inlined_call_operand.hbm [shape: bf16[256,256], index: 4, kind: input, shape index: {}]
  %s5 = inlined_call_operand.vmem [shape: f32[1,256], index: 5, kind: input, shape index: {}]
  %s6 = inlined_call_operand.hbm [shape: bf16[256,256], index: 6, kind: input, shape index: {}]
  %s7 = inlined_call_operand.vmem [shape: f32[1,256], index: 7, kind: input, shape index: {}]
  %s8 = inlined_call_operand.hbm [shape: bf16[256,256], index: 8, kind: input, shape index: {}]
  %s9 = inlined_call_operand.vmem [shape: f32[1,256], index: 9, kind: input, shape index: {}]
  %s10 = inlined_call_operand.hbm [shape: f32[16,256], index: 10, kind: output, shape index: {}]
  %s11 = sld [smem:[#allocation0]]
  $region74: #{tpu_custom_call.1} parent=0
    _
  %s13 = ssub.s32 1, %s11
  %s14 = scalar_select 0, %s13, %s11
  $region1: #{tpu_custom_call.1} parent=0
    #allocation2 [shape = 'u8[8192]{0}', space=vmem, size = 0x2000, scoped, tag = 'input window, operand 0, single buffered']
    #allocation3 [shape = 's32[1]{0}', space=sflag, size = 0x4, scoped, tag = 'scoped memory for tpu_custom_call.1']
    #allocation4 [shape = 's32[1]{0}', space=sflag, size = 0x4, scoped, tag = 'scoped memory for tpu_custom_call.1']
    #allocation5 [shape = 'u8[8192]{0}', space=vmem, size = 0x2000, scoped, tag = 'input window, operand 1, single buffered']
    #allocation6 [shape = 's32[1]{0}', space=sflag, size = 0x4, scoped, tag = 'scoped memory for tpu_custom_call.1']
    #allocation7 [shape = 'u8[65536]{0}', space=vmem, size = 0x10000, scoped, tag = 'input window, operand 2, single buffered']
    #allocation8 [shape = 'u8[131072]{0}', space=vmem, size = 0x20000, scoped, tag = 'input window, operand 4, single buffered']
    #allocation9 [shape = 's32[1]{0}', space=sflag, size = 0x4, scoped, tag = 'scoped memory for tpu_custom_call.1']
    #allocation10 [shape = 'u8[131072]{0}', space=vmem, size = 0x20000, scoped, tag = 'input window, operand 6, single buffered']
    #allocation11 [shape = 'u8[131072]{0}', space=vmem, size = 0x20000, scoped, tag = 'input window, operand 8, single buffered']
    #allocation12 [shape = 's32[1]{0}', space=sflag, size = 0x4, scoped, tag = 'scoped memory for tpu_custom_call.1']
    #allocation13 [shape = 'u8[16384]{0}', space=vmem, size = 0x4000, scoped, tag = 'output window, operand 0, single buffered']
    %15 = vsyncpa [#allocation3], 0
    %16 = vsyncpa [#allocation6], 0
    %17 = vsyncpa [#allocation9], 0
    %18 = vsyncpa [#allocation12], 0
    %19 = vsyncpa [#allocation4], 0
    // Predicated region
    $region2: #{tpu_custom_call.1} parent=1 // pred_check
      _
    $region3: #{tpu_custom_call.1} parent=1 // pred_check_branch
      %21 = sbr.rel (0) target = $region5
    $region4: #{tpu_custom_call.1} parent=1 // pred_region
      %s23 = ssub.s32 256, 256
      %24 = vsyncadd [#allocation3], %s23
      %s25 = sshll.u32 [#allocation2], 4
      %s26 = int_to_ptr.vmem [resolvable:$true] %s25
      %31 = dma.hbm_to_vmem [thread:$0]  %s0, 256, %s26, [#allocation3], 128, 128, 8
    $region5: #{tpu_custom_call.1} parent=1 // pred_fallthru
      _
    // Predicated region
    $region6: #{tpu_custom_call.1} parent=1 // pred_check
      _
    $region7: #{tpu_custom_call.1} parent=1 // pred_check_branch
      %33 = sbr.rel (0) target = $region9
    $region8: #{tpu_custom_call.1} parent=1 // pred_region
      %s35 = ssub.s32 256, 256
      %36 = vsyncadd [#allocation6], %s35
      %s37 = sshll.u32 [#allocation5], 4
      %s38 = int_to_ptr.vmem [resolvable:$true] %s37
      %43 = dma.hbm_to_vmem [thread:$0]  %s1, 256, %s38, [#allocation6], 128, 128, 8
    $region9: #{tpu_custom_call.1} parent=1 // pred_fallthru
      _
    // Predicated region
    $region10: #{tpu_custom_call.1} parent=1 // pred_check
      _
    $region11: #{tpu_custom_call.1} parent=1 // pred_check_branch
      %45 = sbr.rel (0) target = $region13
    $region12: #{tpu_custom_call.1} parent=1 // pred_region
      %s47 = ssub.s32 2048, 2048
      %48 = vsyncadd [#allocation6], %s47
      %s49 = sshll.u32 [#allocation7], 4
      %s50 = int_to_ptr.vmem [resolvable:$true] %s49
      %55 = dma.hbm_to_vmem [thread:$0]  %s2, 2048, %s50, [#allocation6], 128, 128, 8
    $region13: #{tpu_custom_call.1} parent=1 // pred_fallthru
      _
    // Predicated region
    $region14: #{tpu_custom_call.1} parent=1 // pred_check
      _
    $region15: #{tpu_custom_call.1} parent=1 // pred_check_branch
      %57 = sbr.rel (0) target = $region17
    $region16: #{tpu_custom_call.1} parent=1 // pred_region
      _
    $region17: #{tpu_custom_call.1} parent=1 // pred_fallthru
      _
    // Predicated region
    $region18: #{tpu_custom_call.1} parent=1 // pred_check
      _
    $region19: #{tpu_custom_call.1} parent=1 // pred_check_branch
      %59 = sbr.rel (0) target = $region21
    $region20: #{tpu_custom_call.1} parent=1 // pred_region
      %s61 = ssub.s32 4096, 4096
      %62 = vsyncadd [#allocation9], %s61
      %s63 = sshll.u32 [#allocation8], 4
      %s64 = int_to_ptr.vmem [resolvable:$true] %s63
      %69 = dma.hbm_to_vmem [thread:$0]  %s4, 4096, %s64, [#allocation9], 128, 128, 8
    $region21: #{tpu_custom_call.1} parent=1 // pred_fallthru
      _
    // Predicated region
    $region22: #{tpu_custom_call.1} parent=1 // pred_check
      _
    $region23: #{tpu_custom_call.1} parent=1 // pred_check_branch
      %71 = sbr.rel (0) target = $region25
    $region24: #{tpu_custom_call.1} parent=1 // pred_region
      _
    $region25: #{tpu_custom_call.1} parent=1 // pred_fallthru
      _
    // Predicated region
    $region26: #{tpu_custom_call.1} parent=1 // pred_check
      _
    $region27: #{tpu_custom_call.1} parent=1 // pred_check_branch
      %73 = sbr.rel (0) target = $region29
    $region28: #{tpu_custom_call.1} parent=1 // pred_region
      %s75 = ssub.s32 4096, 4096
      %76 = vsyncadd [#allocation9], %s75
      %s77 = sshll.u32 [#allocation10], 4
      %s78 = int_to_ptr.vmem [resolvable:$true] %s77
      %83 = dma.hbm_to_vmem [thread:$0]  %s6, 4096, %s78, [#allocation9], 128, 128, 8
    $region29: #{tpu_custom_call.1} parent=1 // pred_fallthru
      _
    // Predicated region
    $region30: #{tpu_custom_call.1} parent=1 // pred_check
      _
    $region31: #{tpu_custom_call.1} parent=1 // pred_check_branch
      %85 = sbr.rel (0) target = $region33
    $region32: #{tpu_custom_call.1} parent=1 // pred_region
      _
    $region33: #{tpu_custom_call.1} parent=1 // pred_fallthru
      _
    // Predicated region
    $region34: #{tpu_custom_call.1} parent=1 // pred_check
      _
    $region35: #{tpu_custom_call.1} parent=1 // pred_check_branch
      %87 = sbr.rel (0) target = $region37
    $region36: #{tpu_custom_call.1} parent=1 // pred_region
      %s89 = ssub.s32 4096, 4096
      %90 = vsyncadd [#allocation12], %s89
      %s91 = sshll.u32 [#allocation11], 4
      %s92 = int_to_ptr.vmem [resolvable:$true] %s91
      %97 = dma.hbm_to_vmem [thread:$0]  %s8, 4096, %s92, [#allocation12], 128, 128, 8
    $region37: #{tpu_custom_call.1} parent=1 // pred_fallthru
      _
    // Predicated region
    $region38: #{tpu_custom_call.1} parent=1 // pred_check
      _
    $region39: #{tpu_custom_call.1} parent=1 // pred_check_branch
      %99 = sbr.rel (0) target = $region41
    $region40: #{tpu_custom_call.1} parent=1 // pred_region
      _
    $region41: #{tpu_custom_call.1} parent=1 // pred_fallthru
      _
    // Predicated region
    $region42: #{tpu_custom_call.1} parent=1 // pred_check
      _
    $region43: #{tpu_custom_call.1} parent=1 // pred_check_branch
      %101 = sbr.rel (0) target = $region45
    $region44: #{tpu_custom_call.1} parent=1 // pred_region
      %102 = dma.done [#allocation3], 256
    $region45: #{tpu_custom_call.1} parent=1 // pred_fallthru
      _
    // Predicated region
    $region46: #{tpu_custom_call.1} parent=1 // pred_check
      _
    $region47: #{tpu_custom_call.1} parent=1 // pred_check_branch
      %104 = sbr.rel (0) target = $region49
    $region48: #{tpu_custom_call.1} parent=1 // pred_region
      %105 = dma.done [#allocation6], 256
    $region49: #{tpu_custom_call.1} parent=1 // pred_fallthru
      _
    // Predicated region
    $region50: #{tpu_custom_call.1} parent=1 // pred_check
      _
    $region51: #{tpu_custom_call.1} parent=1 // pred_check_branch
      %107 = sbr.rel (0) target = $region53
    $region52: #{tpu_custom_call.1} parent=1 // pred_region
      %108 = dma.done [#allocation6], 2048
    $region53: #{tpu_custom_call.1} parent=1 // pred_fallthru
      _
    // Predicated region
    $region54: #{tpu_custom_call.1} parent=1 // pred_check
      _
    $region55: #{tpu_custom_call.1} parent=1 // pred_check_branch
      %110 = sbr.rel (0) target = $region57
    $region56: #{tpu_custom_call.1} parent=1 // pred_region
      %111 = dma.done [#allocation9], 4096
    $region57: #{tpu_custom_call.1} parent=1 // pred_fallthru
      _
    // Predicated region
    $region58: #{tpu_custom_call.1} parent=1 // pred_check
      _
    $region59: #{tpu_custom_call.1} parent=1 // pred_check_branch
      %113 = sbr.rel (0) target = $region61
    $region60: #{tpu_custom_call.1} parent=1 // pred_region
      %114 = dma.done [#allocation9], 4096
    $region61: #{tpu_custom_call.1} parent=1 // pred_fallthru
      _
    // Predicated region
    $region62: #{tpu_custom_call.1} parent=1 // pred_check
      _
    $region63: #{tpu_custom_call.1} parent=1 // pred_check_branch
      %116 = sbr.rel (0) target = $region65
    $region64: #{tpu_custom_call.1} parent=1 // pred_region
      %117 = dma.done [#allocation12], 4096
    $region65: #{tpu_custom_call.1} parent=1 // pred_fallthru
      _
    %v119 = vld [vmem:[#allocation2] sm:$0xff]
    %v120 = vld [vmem:[#allocation2 + $0x8] sm:$0xff]
    %v121 = vpack.c.bf16 %v120, %v119
    %v122 = vld [vmem:[#allocation7] sm:$0xff]
    %v123 = vld [vmem:[#allocation7 + $0x8] sm:$0xff]
    %v124 = vld [vmem:[#allocation7 + $0x10] sm:$0xff]
    %v125 = vld [vmem:[#allocation7 + $0x18] sm:$0xff]
    %v126 = vld [vmem:[#allocation7 + $0x20] sm:$0xff]
    %v127 = vld [vmem:[#allocation7 + $0x28] sm:$0xff]
    %v128 = vld [vmem:[#allocation7 + $0x30] sm:$0xff]
    %v129 = vld [vmem:[#allocation7 + $0x38] sm:$0xff]
    %v130 = vld [vmem:[#allocation7 + $0x40] sm:$0xff]
    %v131 = vld [vmem:[#allocation7 + $0x48] sm:$0xff]
    %v132 = vld [vmem:[#allocation7 + $0x50] sm:$0xff]
    %v133 = vld [vmem:[#allocation7 + $0x58] sm:$0xff]
    %v134 = vld [vmem:[#allocation7 + $0x60] sm:$0xff]
    %v135 = vld [vmem:[#allocation7 + $0x68] sm:$0xff]
    %v136 = vld [vmem:[#allocation7 + $0x70] sm:$0xff]
    %v137 = vld [vmem:[#allocation7 + $0x78] sm:$0xff]
    %v138 = vld [vmem:[%s3] sm:$0x3]
    %v140 = vlaneseq
    %v141 = vshrl.u32 %v140, 7
    %v142 = vsub.s32 0, %v141
    %v143 = vrot.slane %v138, %v142
    %v144 = vlaneseq
    %v145 = vshrl.u32 %v144, 7
    %v146 = vsub.s32 1, %v145
    %v147 = vrot.slane %v138, %v146
    %v166 = vunpack.c.l.b16 %v122
    %v167 = vunpack.c.h.b16 %v122
    %v168 = vunpack.c.l.b16 %v123
    %v169 = vunpack.c.h.b16 %v123
    %v170 = vunpack.c.l.b16 %v124
    %v171 = vunpack.c.h.b16 %v124
    %v172 = vunpack.c.l.b16 %v125
    %v173 = vunpack.c.h.b16 %v125
    %v174 = vunpack.c.l.b16 %v126
    %v175 = vunpack.c.h.b16 %v126
    %v176 = vunpack.c.l.b16 %v127
    %v177 = vunpack.c.h.b16 %v127
    %v178 = vunpack.c.l.b16 %v128
    %v179 = vunpack.c.h.b16 %v128
    %v180 = vunpack.c.l.b16 %v129
    %v181 = vunpack.c.h.b16 %v129
    %v182 = vunpack.c.l.b16 %v130
    %v183 = vunpack.c.h.b16 %v130
    %v184 = vunpack.c.l.b16 %v131
    %v185 = vunpack.c.h.b16 %v131
    %v186 = vunpack.c.l.b16 %v132
    %v187 = vunpack.c.h.b16 %v132
    %v188 = vunpack.c.l.b16 %v133
    %v189 = vunpack.c.h.b16 %v133
    %v190 = vunpack.c.l.b16 %v134
    %v191 = vunpack.c.h.b16 %v134
    %v192 = vunpack.c.l.b16 %v135
    %v193 = vunpack.c.h.b16 %v135
    %v194 = vunpack.c.l.b16 %v136
    %v195 = vunpack.c.h.b16 %v136
    %v196 = vunpack.c.l.b16 %v137
    %v197 = vunpack.c.h.b16 %v137
    %v198 = vpack.c.b16 %v168, %v166
    %v199 = vpack.c.b16 %v169, %v167
    %v200 = vpack.c.b16 %v172, %v170
    %v201 = vpack.c.b16 %v173, %v171
    %v202 = vpack.c.b16 %v176, %v174
    %v203 = vpack.c.b16 %v177, %v175
    %v204 = vpack.c.b16 %v180, %v178
    %v205 = vpack.c.b16 %v181, %v179
    %v206 = vpack.c.b16 %v184, %v182
    %v207 = vpack.c.b16 %v185, %v183
    %v208 = vpack.c.b16 %v188, %v186
    %v209 = vpack.c.b16 %v189, %v187
    %v210 = vpack.c.b16 %v192, %v190
    %v211 = vpack.c.b16 %v193, %v191
    %v212 = vpack.c.b16 %v196, %v194
    %v213 = vpack.c.b16 %v197, %v195
    %230 = vmatprep.subr.bf16.mxu0 %v213
    %231 = vmatpush1.bf16.msra.mxu0 %v212
    %232 = vmatprep.subr.bf16.mxu0 %v211
    %233 = vmatpush1.bf16.msra.mxu0 %v210
    %234 = vmatprep.subr.bf16.mxu0 %v209
    %235 = vmatpush1.bf16.msra.mxu0 %v208
    %236 = vmatprep.subr.bf16.mxu0 %v207
    %237 = vmatpush1.bf16.msra.mxu0 %v206
    %238 = vmatprep.subr.bf16.mxu0 %v205
    %239 = vmatpush1.bf16.msra.mxu0 %v204
    %240 = vmatprep.subr.bf16.mxu0 %v203
    %241 = vmatpush1.bf16.msra.mxu0 %v202
    %242 = vmatprep.subr.bf16.mxu0 %v201
    %243 = vmatpush1.bf16.msra.mxu0 %v200
    %244 = vmatprep.subr.bf16.mxu0 %v199
    %245 = vmatpush1.bf16.msra.mxu0 %v198
    %246 = vmatprep.subr.bf16.mxu0 0
    %247 = vmatpush2.bf16.msra.mxu0 0
    %248 = vmatprep.subr.bf16.mxu0 0
    %249 = vmatpush2.bf16.msra.mxu0 0
    %250 = vmatprep.subr.bf16.mxu0 0
    %251 = vmatpush2.bf16.msra.mxu0 0
    %252 = vmatprep.subr.bf16.mxu0 0
    %253 = vmatpush2.bf16.msra.mxu0 0
    %254 = vmatprep.subr.bf16.mxu0 0
    %255 = vmatpush2.bf16.msra.mxu0 0
    %256 = vmatprep.subr.bf16.mxu0 0
    %257 = vmatpush2.bf16.msra.mxu0 0
    %258 = vmatprep.subr.bf16.mxu0 0
    %259 = vmatpush2.bf16.msra.mxu0 0
    %260 = vmatprep.subr.bf16.mxu0 0
    %261 = vmatpush2.bf16.msra.mxu0 0
    %262 = vmatprep.mubr.bf16.mxu0 0
    %263 = vmatmul.mubr.bf16.gmra.mxu0 %v121
    %v264 = vpop.f32.mrf.mxu0
    %v265 = vadd.f32 %v143, %v264
    %v266 = vpop.f32.mrf.mxu0
    %v267 = vadd.f32 %v147, %v266
    %v268 = vpop.f32.mrf.mxu0
    %v269 = vadd.f32 %v143, %v268
    %v270 = vpop.f32.mrf.mxu0
    %v271 = vadd.f32 %v147, %v270
    %272 = vdwg.mxu0
    %v273 = vmax.f32 %v265, 0.0
    %v274 = vmax.f32 %v267, 0.0
    %v275 = vmax.f32 %v269, 0.0
    %v276 = vmax.f32 %v271, 0.0
    %v277 = vpack.c.bf16 %v275, %v273
    %v278 = vpack.c.bf16 %v276, %v274
    %v279 = vld [vmem:[#allocation8] sm:$0xff]
    %v280 = vld [vmem:[#allocation8 + $0x8] sm:$0xff]
    %v281 = vld [vmem:[#allocation8 + $0x10] sm:$0xff]
    %v282 = vld [vmem:[#allocation8 + $0x18] sm:$0xff]
    %v283 = vld [vmem:[#allocation8 + $0x20] sm:$0xff]
    %v284 = vld [vmem:[#allocation8 + $0x28] sm:$0xff]
    %v285 = vld [vmem:[#allocation8 + $0x30] sm:$0xff]
    %v286 = vld [vmem:[#allocation8 + $0x38] sm:$0xff]
    %v287 = vld [vmem:[#allocation8 + $0x40] sm:$0xff]
    %v288 = vld [vmem:[#allocation8 + $0x48] sm:$0xff]
    %v289 = vld [vmem:[#allocation8 + $0x50] sm:$0xff]
    %v290 = vld [vmem:[#allocation8 + $0x58] sm:$0xff]
    %v291 = vld [vmem:[#allocation8 + $0x60] sm:$0xff]
    %v292 = vld [vmem:[#allocation8 + $0x68] sm:$0xff]
    %v293 = vld [vmem:[#allocation8 + $0x70] sm:$0xff]
    %v294 = vld [vmem:[#allocation8 + $0x78] sm:$0xff]
    %v295 = vld [vmem:[#allocation8 + $0x80] sm:$0xff]
    %v296 = vld [vmem:[#allocation8 + $0x88] sm:$0xff]
    %v297 = vld [vmem:[#allocation8 + $0x90] sm:$0xff]
    %v298 = vld [vmem:[#allocation8 + $0x98] sm:$0xff]
    %v299 = vld [vmem:[#allocation8 + $0xa0] sm:$0xff]
    %v300 = vld [vmem:[#allocation8 + $0xa8] sm:$0xff]
    %v301 = vld [vmem:[#allocation8 + $0xb0] sm:$0xff]
    %v302 = vld [vmem:[#allocation8 + $0xb8] sm:$0xff]
    %v303 = vld [vmem:[#allocation8 + $0xc0] sm:$0xff]
    %v304 = vld [vmem:[#allocation8 + $0xc8] sm:$0xff]
    %v305 = vld [vmem:[#allocation8 + $0xd0] sm:$0xff]
    %v306 = vld [vmem:[#allocation8 + $0xd8] sm:$0xff]
    %v307 = vld [vmem:[#allocation8 + $0xe0] sm:$0xff]
    %v308 = vld [vmem:[#allocation8 + $0xe8] sm:$0xff]
    %v309 = vld [vmem:[#allocation8 + $0xf0] sm:$0xff]
    %v310 = vld [vmem:[#allocation8 + $0xf8] sm:$0xff]
    %v311 = vld [vmem:[%s5] sm:$0x3]
    %v313 = vlaneseq
    %v314 = vshrl.u32 %v313, 7
    %v315 = vsub.s32 0, %v314
    %v316 = vrot.slane %v311, %v315
    %v317 = vlaneseq
    %v318 = vshrl.u32 %v317, 7
    %v319 = vsub.s32 1, %v318
    %v320 = vrot.slane %v311, %v319
    %v355 = vunpack.c.l.b16 %v279
    %v356 = vunpack.c.h.b16 %v279
    %v357 = vunpack.c.l.b16 %v280
    %v358 = vunpack.c.h.b16 %v280
    %v359 = vunpack.c.l.b16 %v281
    %v360 = vunpack.c.h.b16 %v281
    %v361 = vunpack.c.l.b16 %v282
    %v362 = vunpack.c.h.b16 %v282
    %v363 = vunpack.c.l.b16 %v283
    %v364 = vunpack.c.h.b16 %v283
    %v365 = vunpack.c.l.b16 %v284
    %v366 = vunpack.c.h.b16 %v284
    %v367 = vunpack.c.l.b16 %v285
    %v368 = vunpack.c.h.b16 %v285
    %v369 = vunpack.c.l.b16 %v286
    %v370 = vunpack.c.h.b16 %v286
    %v371 = vunpack.c.l.b16 %v287
    %v372 = vunpack.c.h.b16 %v287
    %v373 = vunpack.c.l.b16 %v288
    %v374 = vunpack.c.h.b16 %v288
    %v375 = vunpack.c.l.b16 %v289
    %v376 = vunpack.c.h.b16 %v289
    %v377 = vunpack.c.l.b16 %v290
    %v378 = vunpack.c.h.b16 %v290
    %v379 = vunpack.c.l.b16 %v291
    %v380 = vunpack.c.h.b16 %v291
    %v381 = vunpack.c.l.b16 %v292
    %v382 = vunpack.c.h.b16 %v292
    %v383 = vunpack.c.l.b16 %v293
    %v384 = vunpack.c.h.b16 %v293
    %v385 = vunpack.c.l.b16 %v294
    %v386 = vunpack.c.h.b16 %v294
    %v387 = vunpack.c.l.b16 %v295
    %v388 = vunpack.c.h.b16 %v295
    %v389 = vunpack.c.l.b16 %v296
    %v390 = vunpack.c.h.b16 %v296
    %v391 = vunpack.c.l.b16 %v297
    %v392 = vunpack.c.h.b16 %v297
    %v393 = vunpack.c.l.b16 %v298
    %v394 = vunpack.c.h.b16 %v298
    %v395 = vunpack.c.l.b16 %v299
    %v396 = vunpack.c.h.b16 %v299
    %v397 = vunpack.c.l.b16 %v300
    %v398 = vunpack.c.h.b16 %v300
    %v399 = vunpack.c.l.b16 %v301
    %v400 = vunpack.c.h.b16 %v301
    %v401 = vunpack.c.l.b16 %v302
    %v402 = vunpack.c.h.b16 %v302
    %v403 = vunpack.c.l.b16 %v303
    %v404 = vunpack.c.h.b16 %v303
    %v405 = vunpack.c.l.b16 %v304
    %v406 = vunpack.c.h.b16 %v304
    %v407 = vunpack.c.l.b16 %v305
    %v408 = vunpack.c.h.b16 %v305
    %v409 = vunpack.c.l.b16 %v306
    %v410 = vunpack.c.h.b16 %v306
    %v411 = vunpack.c.l.b16 %v307
    %v412 = vunpack.c.h.b16 %v307
    %v413 = vunpack.c.l.b16 %v308
    %v414 = vunpack.c.h.b16 %v308
    %v415 = vunpack.c.l.b16 %v309
    %v416 = vunpack.c.h.b16 %v309
    %v417 = vunpack.c.l.b16 %v310
    %v418 = vunpack.c.h.b16 %v310
    %v419 = vpack.c.b16 %v357, %v355
    %v420 = vpack.c.b16 %v358, %v356
    %v421 = vpack.c.b16 %v361, %v359
    %v422 = vpack.c.b16 %v362, %v360
    %v423 = vpack.c.b16 %v365, %v363
    %v424 = vpack.c.b16 %v366, %v364
    %v425 = vpack.c.b16 %v369, %v367
    %v426 = vpack.c.b16 %v370, %v368
    %v427 = vpack.c.b16 %v373, %v371
    %v428 = vpack.c.b16 %v374, %v372
    %v429 = vpack.c.b16 %v377, %v375
    %v430 = vpack.c.b16 %v378, %v376
    %v431 = vpack.c.b16 %v381, %v379
    %v432 = vpack.c.b16 %v382, %v380
    %v433 = vpack.c.b16 %v385, %v383
    %v434 = vpack.c.b16 %v386, %v384
    %v435 = vpack.c.b16 %v389, %v387
    %v436 = vpack.c.b16 %v390, %v388
    %v437 = vpack.c.b16 %v393, %v391
    %v438 = vpack.c.b16 %v394, %v392
    %v439 = vpack.c.b16 %v397, %v395
    %v440 = vpack.c.b16 %v398, %v396
    %v441 = vpack.c.b16 %v401, %v399
    %v442 = vpack.c.b16 %v402, %v400
    %v443 = vpack.c.b16 %v405, %v403
    %v444 = vpack.c.b16 %v406, %v404
    %v445 = vpack.c.b16 %v409, %v407
    %v446 = vpack.c.b16 %v410, %v408
    %v447 = vpack.c.b16 %v413, %v411
    %v448 = vpack.c.b16 %v414, %v412
    %v449 = vpack.c.b16 %v417, %v415
    %v450 = vpack.c.b16 %v418, %v416
    %483 = vmatprep.subr.bf16.mxu0 %v434
    %484 = vmatpush1.bf16.msra.mxu0 %v433
    %485 = vmatprep.subr.bf16.mxu0 %v432
    %486 = vmatpush1.bf16.msra.mxu0 %v431
    %487 = vmatprep.subr.bf16.mxu0 %v430
    %488 = vmatpush1.bf16.msra.mxu0 %v429
    %489 = vmatprep.subr.bf16.mxu0 %v428
    %490 = vmatpush1.bf16.msra.mxu0 %v427
    %491 = vmatprep.subr.bf16.mxu0 %v426
    %492 = vmatpush1.bf16.msra.mxu0 %v425
    %493 = vmatprep.subr.bf16.mxu0 %v424
    %494 = vmatpush1.bf16.msra.mxu0 %v423
    %495 = vmatprep.subr.bf16.mxu0 %v422
    %496 = vmatpush1.bf16.msra.mxu0 %v421
    %497 = vmatprep.subr.bf16.mxu0 %v420
    %498 = vmatpush1.bf16.msra.mxu0 %v419
    %499 = vmatprep.subr.bf16.mxu0 %v450
    %500 = vmatpush2.bf16.msra.mxu0 %v449
    %501 = vmatprep.subr.bf16.mxu0 %v448
    %502 = vmatpush2.bf16.msra.mxu0 %v447
    %503 = vmatprep.subr.bf16.mxu0 %v446
    %504 = vmatpush2.bf16.msra.mxu0 %v445
    %505 = vmatprep.subr.bf16.mxu0 %v444
    %506 = vmatpush2.bf16.msra.mxu0 %v443
    %507 = vmatprep.subr.bf16.mxu0 %v442
    %508 = vmatpush2.bf16.msra.mxu0 %v441
    %509 = vmatprep.subr.bf16.mxu0 %v440
    %510 = vmatpush2.bf16.msra.mxu0 %v439
    %511 = vmatprep.subr.bf16.mxu0 %v438
    %512 = vmatpush2.bf16.msra.mxu0 %v437
    %513 = vmatprep.subr.bf16.mxu0 %v436
    %514 = vmatpush2.bf16.msra.mxu0 %v435
    %515 = vmatprep.mubr.bf16.mxu0 %v278
    %516 = vmatmul.mubr.bf16.gmra.mxu0 %v277
    %v517 = vpop.f32.mrf.mxu0
    %v518 = vadd.f32 %v316, %v517
    %v519 = vpop.f32.mrf.mxu0
    %v520 = vadd.f32 %v320, %v519
    %v521 = vpop.f32.mrf.mxu0
    %v522 = vadd.f32 %v316, %v521
    %v523 = vpop.f32.mrf.mxu0
    %v524 = vadd.f32 %v320, %v523
    %525 = vdwg.mxu0
    %v526 = vmax.f32 %v518, 0.0
    %v527 = vmax.f32 %v520, 0.0
    %v528 = vmax.f32 %v522, 0.0
    %v529 = vmax.f32 %v524, 0.0
    %v530 = vpack.c.bf16 %v528, %v526
    %v531 = vpack.c.bf16 %v529, %v527
    %v532 = vld [vmem:[#allocation10] sm:$0xff]
    %v533 = vld [vmem:[#allocation10 + $0x8] sm:$0xff]
    %v534 = vld [vmem:[#allocation10 + $0x10] sm:$0xff]
    %v535 = vld [vmem:[#allocation10 + $0x18] sm:$0xff]
    %v536 = vld [vmem:[#allocation10 + $0x20] sm:$0xff]
    %v537 = vld [vmem:[#allocation10 + $0x28] sm:$0xff]
    %v538 = vld [vmem:[#allocation10 + $0x30] sm:$0xff]
    %v539 = vld [vmem:[#allocation10 + $0x38] sm:$0xff]
    %v540 = vld [vmem:[#allocation10 + $0x40] sm:$0xff]
    %v541 = vld [vmem:[#allocation10 + $0x48] sm:$0xff]
    %v542 = vld [vmem:[#allocation10 + $0x50] sm:$0xff]
    %v543 = vld [vmem:[#allocation10 + $0x58] sm:$0xff]
    %v544 = vld [vmem:[#allocation10 + $0x60] sm:$0xff]
    %v545 = vld [vmem:[#allocation10 + $0x68] sm:$0xff]
    %v546 = vld [vmem:[#allocation10 + $0x70] sm:$0xff]
    %v547 = vld [vmem:[#allocation10 + $0x78] sm:$0xff]
    %v548 = vld [vmem:[#allocation10 + $0x80] sm:$0xff]
    %v549 = vld [vmem:[#allocation10 + $0x88] sm:$0xff]
    %v550 = vld [vmem:[#allocation10 + $0x90] sm:$0xff]
    %v551 = vld [vmem:[#allocation10 + $0x98] sm:$0xff]
    %v552 = vld [vmem:[#allocation10 + $0xa0] sm:$0xff]
    %v553 = vld [vmem:[#allocation10 + $0xa8] sm:$0xff]
    %v554 = vld [vmem:[#allocation10 + $0xb0] sm:$0xff]
    %v555 = vld [vmem:[#allocation10 + $0xb8] sm:$0xff]
    %v556 = vld [vmem:[#allocation10 + $0xc0] sm:$0xff]
    %v557 = vld [vmem:[#allocation10 + $0xc8] sm:$0xff]
    %v558 = vld [vmem:[#allocation10 + $0xd0] sm:$0xff]
    %v559 = vld [vmem:[#allocation10 + $0xd8] sm:$0xff]
    %v560 = vld [vmem:[#allocation10 + $0xe0] sm:$0xff]
    %v561 = vld [vmem:[#allocation10 + $0xe8] sm:$0xff]
    %v562 = vld [vmem:[#allocation10 + $0xf0] sm:$0xff]
    %v563 = vld [vmem:[#allocation10 + $0xf8] sm:$0xff]
    %v564 = vld [vmem:[%s7] sm:$0x3]
    %v566 = vlaneseq
    %v567 = vshrl.u32 %v566, 7
    %v568 = vsub.s32 0, %v567
    %v569 = vrot.slane %v564, %v568
    %v570 = vlaneseq
    %v571 = vshrl.u32 %v570, 7
    %v572 = vsub.s32 1, %v571
    %v573 = vrot.slane %v564, %v572
    %v608 = vunpack.c.l.b16 %v532
    %v609 = vunpack.c.h.b16 %v532
    %v610 = vunpack.c.l.b16 %v533
    %v611 = vunpack.c.h.b16 %v533
    %v612 = vunpack.c.l.b16 %v534
    %v613 = vunpack.c.h.b16 %v534
    %v614 = vunpack.c.l.b16 %v535
    %v615 = vunpack.c.h.b16 %v535
    %v616 = vunpack.c.l.b16 %v536
    %v617 = vunpack.c.h.b16 %v536
    %v618 = vunpack.c.l.b16 %v537
    %v619 = vunpack.c.h.b16 %v537
    %v620 = vunpack.c.l.b16 %v538
    %v621 = vunpack.c.h.b16 %v538
    %v622 = vunpack.c.l.b16 %v539
    %v623 = vunpack.c.h.b16 %v539
    %v624 = vunpack.c.l.b16 %v540
    %v625 = vunpack.c.h.b16 %v540
    %v626 = vunpack.c.l.b16 %v541
    %v627 = vunpack.c.h.b16 %v541
    %v628 = vunpack.c.l.b16 %v542
    %v629 = vunpack.c.h.b16 %v542
    %v630 = vunpack.c.l.b16 %v543
    %v631 = vunpack.c.h.b16 %v543
    %v632 = vunpack.c.l.b16 %v544
    %v633 = vunpack.c.h.b16 %v544
    %v634 = vunpack.c.l.b16 %v545
    %v635 = vunpack.c.h.b16 %v545
    %v636 = vunpack.c.l.b16 %v546
    %v637 = vunpack.c.h.b16 %v546
    %v638 = vunpack.c.l.b16 %v547
    %v639 = vunpack.c.h.b16 %v547
    %v640 = vunpack.c.l.b16 %v548
    %v641 = vunpack.c.h.b16 %v548
    %v642 = vunpack.c.l.b16 %v549
    %v643 = vunpack.c.h.b16 %v549
    %v644 = vunpack.c.l.b16 %v550
    %v645 = vunpack.c.h.b16 %v550
    %v646 = vunpack.c.l.b16 %v551
    %v647 = vunpack.c.h.b16 %v551
    %v648 = vunpack.c.l.b16 %v552
    %v649 = vunpack.c.h.b16 %v552
    %v650 = vunpack.c.l.b16 %v553
    %v651 = vunpack.c.h.b16 %v553
    %v652 = vunpack.c.l.b16 %v554
    %v653 = vunpack.c.h.b16 %v554
    %v654 = vunpack.c.l.b16 %v555
    %v655 = vunpack.c.h.b16 %v555
    %v656 = vunpack.c.l.b16 %v556
    %v657 = vunpack.c.h.b16 %v556
    %v658 = vunpack.c.l.b16 %v557
    %v659 = vunpack.c.h.b16 %v557
    %v660 = vunpack.c.l.b16 %v558
    %v661 = vunpack.c.h.b16 %v558
    %v662 = vunpack.c.l.b16 %v559
    %v663 = vunpack.c.h.b16 %v559
    %v664 = vunpack.c.l.b16 %v560
    %v665 = vunpack.c.h.b16 %v560
    %v666 = vunpack.c.l.b16 %v561
    %v667 = vunpack.c.h.b16 %v561
    %v668 = vunpack.c.l.b16 %v562
    %v669 = vunpack.c.h.b16 %v562
    %v670 = vunpack.c.l.b16 %v563
    %v671 = vunpack.c.h.b16 %v563
    %v672 = vpack.c.b16 %v610, %v608
    %v673 = vpack.c.b16 %v611, %v609
    %v674 = vpack.c.b16 %v614, %v612
    %v675 = vpack.c.b16 %v615, %v613
    %v676 = vpack.c.b16 %v618, %v616
    %v677 = vpack.c.b16 %v619, %v617
    %v678 = vpack.c.b16 %v622, %v620
    %v679 = vpack.c.b16 %v623, %v621
    %v680 = vpack.c.b16 %v626, %v624
    %v681 = vpack.c.b16 %v627, %v625
    %v682 = vpack.c.b16 %v630, %v628
    %v683 = vpack.c.b16 %v631, %v629
    %v684 = vpack.c.b16 %v634, %v632
    %v685 = vpack.c.b16 %v635, %v633
    %v686 = vpack.c.b16 %v638, %v636
    %v687 = vpack.c.b16 %v639, %v637
    %v688 = vpack.c.b16 %v642, %v640
    %v689 = vpack.c.b16 %v643, %v641
    %v690 = vpack.c.b16 %v646, %v644
    %v691 = vpack.c.b16 %v647, %v645
    %v692 = vpack.c.b16 %v650, %v648
    %v693 = vpack.c.b16 %v651, %v649
    %v694 = vpack.c.b16 %v654, %v652
    %v695 = vpack.c.b16 %v655, %v653
    %v696 = vpack.c.b16 %v658, %v656
    %v697 = vpack.c.b16 %v659, %v657
    %v698 = vpack.c.b16 %v662, %v660
    %v699 = vpack.c.b16 %v663, %v661
    %v700 = vpack.c.b16 %v666, %v664
    %v701 = vpack.c.b16 %v667, %v665
    %v702 = vpack.c.b16 %v670, %v668
    %v703 = vpack.c.b16 %v671, %v669
    %736 = vmatprep.subr.bf16.mxu0 %v687
    %737 = vmatpush1.bf16.msra.mxu0 %v686
    %738 = vmatprep.subr.bf16.mxu0 %v685
    %739 = vmatpush1.bf16.msra.mxu0 %v684
    %740 = vmatprep.subr.bf16.mxu0 %v683
    %741 = vmatpush1.bf16.msra.mxu0 %v682
    %742 = vmatprep.subr.bf16.mxu0 %v681
    %743 = vmatpush1.bf16.msra.mxu0 %v680
    %744 = vmatprep.subr.bf16.mxu0 %v679
    %745 = vmatpush1.bf16.msra.mxu0 %v678
    %746 = vmatprep.subr.bf16.mxu0 %v677
    %747 = vmatpush1.bf16.msra.mxu0 %v676
    %748 = vmatprep.subr.bf16.mxu0 %v675
    %749 = vmatpush1.bf16.msra.mxu0 %v674
    %750 = vmatprep.subr.bf16.mxu0 %v673
    %751 = vmatpush1.bf16.msra.mxu0 %v672
    %752 = vmatprep.subr.bf16.mxu0 %v703
    %753 = vmatpush2.bf16.msra.mxu0 %v702
    %754 = vmatprep.subr.bf16.mxu0 %v701
    %755 = vmatpush2.bf16.msra.mxu0 %v700
    %756 = vmatprep.subr.bf16.mxu0 %v699
    %757 = vmatpush2.bf16.msra.mxu0 %v698
    %758 = vmatprep.subr.bf16.mxu0 %v697
    %759 = vmatpush2.bf16.msra.mxu0 %v696
    %760 = vmatprep.subr.bf16.mxu0 %v695
    %761 = vmatpush2.bf16.msra.mxu0 %v694
    %762 = vmatprep.subr.bf16.mxu0 %v693
    %763 = vmatpush2.bf16.msra.mxu0 %v692
    %764 = vmatprep.subr.bf16.mxu0 %v691
    %765 = vmatpush2.bf16.msra.mxu0 %v690
    %766 = vmatprep.subr.bf16.mxu0 %v689
    %767 = vmatpush2.bf16.msra.mxu0 %v688
    %768 = vmatprep.mubr.bf16.mxu0 %v531
    %769 = vmatmul.mubr.bf16.gmra.mxu0 %v530
    %v770 = vpop.f32.mrf.mxu0
    %v771 = vadd.f32 %v569, %v770
    %v772 = vpop.f32.mrf.mxu0
    %v773 = vadd.f32 %v573, %v772
    %v774 = vpop.f32.mrf.mxu0
    %v775 = vadd.f32 %v569, %v774
    %v776 = vpop.f32.mrf.mxu0
    %v777 = vadd.f32 %v573, %v776
    %778 = vdwg.mxu0
    %v779 = vmax.f32 %v771, 0.0
    %v780 = vmax.f32 %v773, 0.0
    %v781 = vmax.f32 %v775, 0.0
    %v782 = vmax.f32 %v777, 0.0
    %v783 = vpack.c.bf16 %v781, %v779
    %v784 = vpack.c.bf16 %v782, %v780
    %v785 = vld [vmem:[#allocation11] sm:$0xff]
    %v786 = vld [vmem:[#allocation11 + $0x8] sm:$0xff]
    %v787 = vld [vmem:[#allocation11 + $0x10] sm:$0xff]
    %v788 = vld [vmem:[#allocation11 + $0x18] sm:$0xff]
    %v789 = vld [vmem:[#allocation11 + $0x20] sm:$0xff]
    %v790 = vld [vmem:[#allocation11 + $0x28] sm:$0xff]
    %v791 = vld [vmem:[#allocation11 + $0x30] sm:$0xff]
    %v792 = vld [vmem:[#allocation11 + $0x38] sm:$0xff]
    %v793 = vld [vmem:[#allocation11 + $0x40] sm:$0xff]
    %v794 = vld [vmem:[#allocation11 + $0x48] sm:$0xff]
    %v795 = vld [vmem:[#allocation11 + $0x50] sm:$0xff]
    %v796 = vld [vmem:[#allocation11 + $0x58] sm:$0xff]
    %v797 = vld [vmem:[#allocation11 + $0x60] sm:$0xff]
    %v798 = vld [vmem:[#allocation11 + $0x68] sm:$0xff]
    %v799 = vld [vmem:[#allocation11 + $0x70] sm:$0xff]
    %v800 = vld [vmem:[#allocation11 + $0x78] sm:$0xff]
    %v801 = vld [vmem:[#allocation11 + $0x80] sm:$0xff]
    %v802 = vld [vmem:[#allocation11 + $0x88] sm:$0xff]
    %v803 = vld [vmem:[#allocation11 + $0x90] sm:$0xff]
    %v804 = vld [vmem:[#allocation11 + $0x98] sm:$0xff]
    %v805 = vld [vmem:[#allocation11 + $0xa0] sm:$0xff]
    %v806 = vld [vmem:[#allocation11 + $0xa8] sm:$0xff]
    %v807 = vld [vmem:[#allocation11 + $0xb0] sm:$0xff]
    %v808 = vld [vmem:[#allocation11 + $0xb8] sm:$0xff]
    %v809 = vld [vmem:[#allocation11 + $0xc0] sm:$0xff]
    %v810 = vld [vmem:[#allocation11 + $0xc8] sm:$0xff]
    %v811 = vld [vmem:[#allocation11 + $0xd0] sm:$0xff]
    %v812 = vld [vmem:[#allocation11 + $0xd8] sm:$0xff]
    %v813 = vld [vmem:[#allocation11 + $0xe0] sm:$0xff]
    %v814 = vld [vmem:[#allocation11 + $0xe8] sm:$0xff]
    %v815 = vld [vmem:[#allocation11 + $0xf0] sm:$0xff]
    %v816 = vld [vmem:[#allocation11 + $0xf8] sm:$0xff]
    %v817 = vld [vmem:[%s9] sm:$0x3]
    %v819 = vlaneseq
    %v820 = vshrl.u32 %v819, 7
    %v821 = vsub.s32 0, %v820
    %v822 = vrot.slane %v817, %v821
    %v823 = vlaneseq
    %v824 = vshrl.u32 %v823, 7
    %v825 = vsub.s32 1, %v824
    %v826 = vrot.slane %v817, %v825
    %v861 = vunpack.c.l.b16 %v785
    %v862 = vunpack.c.h.b16 %v785
    %v863 = vunpack.c.l.b16 %v786
    %v864 = vunpack.c.h.b16 %v786
    %v865 = vunpack.c.l.b16 %v787
    %v866 = vunpack.c.h.b16 %v787
    %v867 = vunpack.c.l.b16 %v788
    %v868 = vunpack.c.h.b16 %v788
    %v869 = vunpack.c.l.b16 %v789
    %v870 = vunpack.c.h.b16 %v789
    %v871 = vunpack.c.l.b16 %v790
    %v872 = vunpack.c.h.b16 %v790
    %v873 = vunpack.c.l.b16 %v791
    %v874 = vunpack.c.h.b16 %v791
    %v875 = vunpack.c.l.b16 %v792
    %v876 = vunpack.c.h.b16 %v792
    %v877 = vunpack.c.l.b16 %v793
    %v878 = vunpack.c.h.b16 %v793
    %v879 = vunpack.c.l.b16 %v794
    %v880 = vunpack.c.h.b16 %v794
    %v881 = vunpack.c.l.b16 %v795
    %v882 = vunpack.c.h.b16 %v795
    %v883 = vunpack.c.l.b16 %v796
    %v884 = vunpack.c.h.b16 %v796
    %v885 = vunpack.c.l.b16 %v797
    %v886 = vunpack.c.h.b16 %v797
    %v887 = vunpack.c.l.b16 %v798
    %v888 = vunpack.c.h.b16 %v798
    %v889 = vunpack.c.l.b16 %v799
    %v890 = vunpack.c.h.b16 %v799
    %v891 = vunpack.c.l.b16 %v800
    %v892 = vunpack.c.h.b16 %v800
    %v893 = vunpack.c.l.b16 %v801
    %v894 = vunpack.c.h.b16 %v801
    %v895 = vunpack.c.l.b16 %v802
    %v896 = vunpack.c.h.b16 %v802
    %v897 = vunpack.c.l.b16 %v803
    %v898 = vunpack.c.h.b16 %v803
    %v899 = vunpack.c.l.b16 %v804
    %v900 = vunpack.c.h.b16 %v804
    %v901 = vunpack.c.l.b16 %v805
    %v902 = vunpack.c.h.b16 %v805
    %v903 = vunpack.c.l.b16 %v806
    %v904 = vunpack.c.h.b16 %v806
    %v905 = vunpack.c.l.b16 %v807
    %v906 = vunpack.c.h.b16 %v807
    %v907 = vunpack.c.l.b16 %v808
    %v908 = vunpack.c.h.b16 %v808
    %v909 = vunpack.c.l.b16 %v809
    %v910 = vunpack.c.h.b16 %v809
    %v911 = vunpack.c.l.b16 %v810
    %v912 = vunpack.c.h.b16 %v810
    %v913 = vunpack.c.l.b16 %v811
    %v914 = vunpack.c.h.b16 %v811
    %v915 = vunpack.c.l.b16 %v812
    %v916 = vunpack.c.h.b16 %v812
    %v917 = vunpack.c.l.b16 %v813
    %v918 = vunpack.c.h.b16 %v813
    %v919 = vunpack.c.l.b16 %v814
    %v920 = vunpack.c.h.b16 %v814
    %v921 = vunpack.c.l.b16 %v815
    %v922 = vunpack.c.h.b16 %v815
    %v923 = vunpack.c.l.b16 %v816
    %v924 = vunpack.c.h.b16 %v816
    %v925 = vpack.c.b16 %v863, %v861
    %v926 = vpack.c.b16 %v864, %v862
    %v927 = vpack.c.b16 %v867, %v865
    %v928 = vpack.c.b16 %v868, %v866
    %v929 = vpack.c.b16 %v871, %v869
    %v930 = vpack.c.b16 %v872, %v870
    %v931 = vpack.c.b16 %v875, %v873
    %v932 = vpack.c.b16 %v876, %v874
    %v933 = vpack.c.b16 %v879, %v877
    %v934 = vpack.c.b16 %v880, %v878
    %v935 = vpack.c.b16 %v883, %v881
    %v936 = vpack.c.b16 %v884, %v882
    %v937 = vpack.c.b16 %v887, %v885
    %v938 = vpack.c.b16 %v888, %v886
    %v939 = vpack.c.b16 %v891, %v889
    %v940 = vpack.c.b16 %v892, %v890
    %v941 = vpack.c.b16 %v895, %v893
    %v942 = vpack.c.b16 %v896, %v894
    %v943 = vpack.c.b16 %v899, %v897
    %v944 = vpack.c.b16 %v900, %v898
    %v945 = vpack.c.b16 %v903, %v901
    %v946 = vpack.c.b16 %v904, %v902
    %v947 = vpack.c.b16 %v907, %v905
    %v948 = vpack.c.b16 %v908, %v906
    %v949 = vpack.c.b16 %v911, %v909
    %v950 = vpack.c.b16 %v912, %v910
    %v951 = vpack.c.b16 %v915, %v913
    %v952 = vpack.c.b16 %v916, %v914
    %v953 = vpack.c.b16 %v919, %v917
    %v954 = vpack.c.b16 %v920, %v918
    %v955 = vpack.c.b16 %v923, %v921
    %v956 = vpack.c.b16 %v924, %v922
    %989 = vmatprep.subr.bf16.mxu0 %v940
    %990 = vmatpush1.bf16.msra.mxu0 %v939
    %991 = vmatprep.subr.bf16.mxu0 %v938
    %992 = vmatpush1.bf16.msra.mxu0 %v937
    %993 = vmatprep.subr.bf16.mxu0 %v936
    %994 = vmatpush1.bf16.msra.mxu0 %v935
    %995 = vmatprep.subr.bf16.mxu0 %v934
    %996 = vmatpush1.bf16.msra.mxu0 %v933
    %997 = vmatprep.subr.bf16.mxu0 %v932
    %998 = vmatpush1.bf16.msra.mxu0 %v931
    %999 = vmatprep.subr.bf16.mxu0 %v930
    %1000 = vmatpush1.bf16.msra.mxu0 %v929
    %1001 = vmatprep.subr.bf16.mxu0 %v928
    %1002 = vmatpush1.bf16.msra.mxu0 %v927
    %1003 = vmatprep.subr.bf16.mxu0 %v926
    %1004 = vmatpush1.bf16.msra.mxu0 %v925
    %1005 = vmatprep.subr.bf16.mxu0 %v956
    %1006 = vmatpush2.bf16.msra.mxu0 %v955
    %1007 = vmatprep.subr.bf16.mxu0 %v954
    %1008 = vmatpush2.bf16.msra.mxu0 %v953
    %1009 = vmatprep.subr.bf16.mxu0 %v952
    %1010 = vmatpush2.bf16.msra.mxu0 %v951
    %1011 = vmatprep.subr.bf16.mxu0 %v950
    %1012 = vmatpush2.bf16.msra.mxu0 %v949
    %1013 = vmatprep.subr.bf16.mxu0 %v948
    %1014 = vmatpush2.bf16.msra.mxu0 %v947
    %1015 = vmatprep.subr.bf16.mxu0 %v946
    %1016 = vmatpush2.bf16.msra.mxu0 %v945
    %1017 = vmatprep.subr.bf16.mxu0 %v944
    %1018 = vmatpush2.bf16.msra.mxu0 %v943
    %1019 = vmatprep.subr.bf16.mxu0 %v942
    %1020 = vmatpush2.bf16.msra.mxu0 %v941
    %1021 = vmatprep.mubr.bf16.mxu0 %v784
    %1022 = vmatmul.mubr.bf16.gmra.mxu0 %v783
    %v1023 = vpop.f32.mrf.mxu0
    %v1024 = vadd.f32 %v822, %v1023
    %v1025 = vpop.f32.mrf.mxu0
    %v1026 = vadd.f32 %v826, %v1025
    %v1027 = vpop.f32.mrf.mxu0
    %v1028 = vadd.f32 %v822, %v1027
    %v1029 = vpop.f32.mrf.mxu0
    %v1030 = vadd.f32 %v826, %v1029
    %1031 = vdwg.mxu0
    %v1032 = vmax.f32 %v1026, 1e-06
    %v1033 = vmax.f32 %v1030, 1e-06
    %v1034 = vmin.f32 %v1032, 1.0
    %v1035 = vmin.f32 %v1033, 1.0
    %v1036 = vld [vmem:[#allocation5] sm:$0xff]
    %v1037 = vld [vmem:[#allocation5 + $0x8] sm:$0xff]
    %v1038 = vmul.f32 %v1034, %v1036
    %v1039 = vmul.f32 %v1035, %v1037
    %v1040 = vadd.f32 %v1024, %v1038
    %v1041 = vadd.f32 %v1028, %v1039
    %v1042 = vtanh.pop %v1040
    %v1043 = vtanh.pop %v1041
    %v1044 = vmul.f32 %v1036, -0.5
    %v1045 = vmul.f32 %v1037, -0.5
    %v1046 = vmul.f32 %v1044, %v1036
    %v1047 = vmul.f32 %v1045, %v1037
    %v1048 = vlog2.pop %v1034
    %v1049 = vmul.f32 %v1048, 0.6931472
    %v1050 = vlog2.pop %v1035
    %v1051 = vmul.f32 %v1050, 0.6931472
    %v1052 = vsub.f32 %v1046, %v1049
    %v1053 = vsub.f32 %v1047, %v1051
    %v1054 = vsub.f32 %v1052, 0.9189385
    %v1055 = vsub.f32 %v1053, 0.9189385
    %v1056 = vmul.f32 %v1042, %v1042
    %v1057 = vmul.f32 %v1043, %v1043
    %v1058 = vsub.f32 1.0, %v1056
    %v1059 = vsub.f32 1.0, %v1057
    %v1060 = vadd.f32 %v1058, 1e-06
    %v1061 = vadd.f32 %v1059, 1e-06
    %v1062 = vlog2.pop %v1060
    %v1063 = vmul.f32 %v1062, 0.6931472
    %v1064 = vlog2.pop %v1061
    %v1065 = vmul.f32 %v1064, 0.6931472
    %v1066 = vsub.f32 %v1054, %v1063
    %v1067 = vsub.f32 %v1055, %v1065
    %v1068 = vmul.f32 %v1042, 2.0
    %v1069 = vmul.f32 %v1043, 2.0
    %1070 = vst [vmem:[#allocation13] sm:$0xff] %v1068
    %1071 = vst [vmem:[#allocation13 + $0x10] sm:$0xff] %v1069
    %1072 = vst [vmem:[#allocation13 + $0x8] sm:$0xff] %v1066
    %1073 = vst [vmem:[#allocation13 + $0x18] sm:$0xff] %v1067
    // Predicated region
    $region66: #{tpu_custom_call.1} parent=1 // pred_check
      _
    $region67: #{tpu_custom_call.1} parent=1 // pred_check_branch
      %1075 = sbr.rel (0) target = $region69
    $region68: #{tpu_custom_call.1} parent=1 // pred_region
      %s1077 = ssub.s32 512, 512
      %1078 = vsyncadd [#allocation4], %s1077
      %s1079 = sshll.u32 [#allocation13], 4
      %s1080 = int_to_ptr.vmem [resolvable:$true] %s1079
      %1085 = dma.vmem_to_hbm [thread:$0]  %s1080, 512, %s10, [#allocation4], 256, 256, 16
    $region69: #{tpu_custom_call.1} parent=1 // pred_fallthru
      _
    // Predicated region
    $region70: #{tpu_custom_call.1} parent=1 // pred_check
      _
    $region71: #{tpu_custom_call.1} parent=1 // pred_check_branch
      %1087 = sbr.rel (0) target = $region73
    $region72: #{tpu_custom_call.1} parent=1 // pred_region
      %1088 = dma.done [#allocation4], 512
    $region73: #{tpu_custom_call.1} parent=1 // pred_fallthru
      _
    %1089 = vsyncpa [#allocation3], 1
    %1090 = vsyncpa [#allocation6], 1
    %1091 = vsyncpa [#allocation9], 1
    %1092 = vsyncpa [#allocation12], 1
    %1093 = vsyncpa [#allocation4], 1

</llo_original>
